<compile_context>
chip_gen: v7x
topology: tpu7x:2x2x1
jax: 0.10.0
libtpu: 0.0.40
codegen_flags: <defaults>
</compile_context>

<pallas_src>
import functools

import jax
import jax.numpy as jnp
from jax.experimental import pallas as pl
from jax.experimental.pallas import tpu as pltpu

_LANE = 128
_SUBLANE = 8
_SPLIT_MIN_BYTES = 2 * 1024 * 1024    # force >= 2 grid steps above this size
_VMEM_SLACK_BYTES = 4 * 1024 * 1024   # headroom for Mosaic internal scratch


def _identity_kernel(x_ref, o_ref):
    # Pure pass-through of the current VMEM tile.
    o_ref[...] = x_ref[...]


@functools.lru_cache(maxsize=None)
def _tile_bytes_target() -> int:
    """~8 MiB tiles on 64-MiB-VMEM chips (v7x class), ~4 MiB elsewhere."""
    try:
        vmem = pltpu.get_tpu_info().vmem_capacity_bytes
    except Exception:
        vmem = 128 * 1024 * 1024
    return (8 if vmem <= 64 * 1024 * 1024 else 4) * 1024 * 1024


def _sublane_pack(itemsize: int) -> int:
    """Sublane packing factor: 8 for >=32-bit, 16 for 16-bit, 32 for 8-bit."""
    if itemsize >= 4:
        return _SUBLANE
    return _SUBLANE * (4 // itemsize)


def _pick_cols(n: int):
    """Largest lane-dense width (multiple of 128, <= 4096) dividing n,
    preferring widths that leave >= 8 rows (full sublane utilization)."""
    cap = min(4096, n)
    divisors = [c for c in range(_LANE, cap + 1, _LANE) if n % c == 0]
    if not divisors:
        return None
    deep = [c for c in divisors if n // c >= _SUBLANE]
    return max(deep) if deep else max(divisors)


def _copy_2d(x2d: jax.Array) -> jax.Array:
    rows, cols = x2d.shape
    itemsize = x2d.dtype.itemsize
    pack = _sublane_pack(itemsize)
    total_bytes = rows * cols * itemsize

    # Row tile targeting ~4/8 MiB, rounded to the dtype's sublane packing.
    tile_r = max(pack, (_tile_bytes_target() // (cols * itemsize)) // pack * pack)
    if tile_r >= rows:
        if total_bytes > _SPLIT_MIN_BYTES and rows > pack:
            # Guarantee >= 2 grid steps so v7x megacore can shard the row axis.
            tile_r = min(rows, pl.cdiv(pl.cdiv(rows, 2), pack) * pack)
        else:
            tile_r = rows                 # single full-extent block
    grid = (pl.cdiv(rows, tile_r),)

    # Double-buffered in + out tiles (+ slack), instead of a blanket 48 MiB.
    tile_bytes = tile_r * cols * itemsize
    vmem_limit = int(max(8 * 1024 * 1024, 4 * tile_bytes + _VMEM_SLACK_BYTES))

    return pl.pallas_call(
        _identity_kernel,
        out_shape=jax.ShapeDtypeStruct((rows, cols), x2d.dtype),
        grid=grid,
        in_specs=[pl.BlockSpec((tile_r, cols), lambda i: (i, 0))],
        out_specs=pl.BlockSpec((tile_r, cols), lambda i: (i, 0)),
        # Output aliases the input: callers that donate x (jit donate_argnums)
        # get the copy written into x's HBM buffer (no second allocation).
        input_output_aliases={0: 0},
        compiler_params=pltpu.CompilerParams(
            dimension_semantics=("parallel",),
            vmem_limit_bytes=vmem_limit,
        ),
        cost_estimate=pl.CostEstimate(
            flops=0,
            transcendentals=0,
            bytes_accessed=2 * total_bytes,
        ),
    )(x2d)


def identity(x: jax.Array) -> jax.Array:
    """Identity.forward(x) -> x.  A true identity needs no data movement at
    all, so (per the perf review) this returns its input untouched.  Use
    identity_copy() when a freshly materialized buffer is required."""
    return x


def identity_copy(x: jax.Array) -> jax.Array:
    """Materialized identity: a fresh tensor bitwise-equal to x, produced by
    the Pallas copy kernel."""
    n = x.size
    if n == 0:
        return x

    flat = x.reshape(-1)
    cols = _pick_cols(n)
    if cols is not None:
        # Fast path: lane-dense 2-D view, no padding, no slicing.
        return _copy_2d(flat.reshape(n // cols, cols)).reshape(x.shape)

    # n % 128 != 0: copy the 128-aligned bulk through the fast path and the
    # (<128-element) tail via a tiny full-extent block, then stitch.  This
    # avoids the old full-size pad + post-slice round-trip (3-4x traffic).
    bulk = (n // _LANE) * _LANE
    pieces = []
    if bulk:
        bcols = _pick_cols(bulk)
        pieces.append(
            _copy_2d(flat[:bulk].reshape(bulk // bcols, bcols)).reshape(-1))
    tail = n - bulk
    if tail:
        pieces.append(_copy_2d(flat[bulk:].reshape(1, tail)).reshape(-1))
    y = pieces[0] if len(pieces) == 1 else jnp.concatenate(pieces)
    return y.reshape(x.shape)


if __name__ == "__main__":
    key = jax.random.PRNGKey(0)

    # Small NCHW input consistent with the (shape-agnostic) module.
    x = jax.random.normal(key, (2, 4, 16, 16), dtype=jnp.float32)

    # 1) True module semantics: forward(x) -> x, zero-copy.
    y = identity(x)
    assert y is x

    # 2) Materialized copy via the Pallas kernel (n divisible by 128 path).
    copy_fn = jax.jit(identity_copy)
    y2 = jax.block_until_ready(copy_fn(x))
    assert y2.shape == x.shape and y2.dtype == x.dtype
    assert bool(jnp.all(y2 == x))

    # 3) Packed dtype (bf16) path — sublane packing factor 16.
    xb = jax.random.normal(key, (4, 8, 48), dtype=jnp.bfloat16)
    yb = jax.block_until_ready(copy_fn(xb))
    assert yb.shape == xb.shape and yb.dtype == xb.dtype
    assert bool(jnp.all(yb == xb))

    # 4) Awkward size (n % 128 != 0) -> pad-free bulk + tail fallback.
    xa = jax.random.normal(key, (6, 25), dtype=jnp.float32)
    ya = jax.block_until_ready(copy_fn(xa))
    assert ya.shape == xa.shape and ya.dtype == xa.dtype
    assert bool(jnp.all(ya == xa))

    print("KERNEL_OK")
</pallas_src>

<mosaic_0001>
module attributes {stable_mosaic.version = 11 : i64} {
  func.func @_identity_kernel(%arg0: i32, %arg1: memref<8x256xf32, #tpu.memory_space<vmem>>, %arg2: memref<8x256xf32, #tpu.memory_space<vmem>>) attributes {dimension_semantics = [#tpu.dimension_semantics<parallel>], iteration_bounds = array<i64: 1>, scalar_prefetch = 0 : i64, scratch_operands = 0 : i64, tpu.core_type = #tpu.core_type<tc>, window_params = [{transform_indices = @transform_0, window_bounds = array<i64: 8, 256>}, {transform_indices = @transform_1, window_bounds = array<i64: 8, 256>}]} {
    %c0 = arith.constant 0 : index
    %c0_0 = arith.constant 0 : index
    %0 = vector.load %arg1[%c0, %c0_0] : memref<8x256xf32, #tpu.memory_space<vmem>>, vector<8x256xf32>
    %c0_1 = arith.constant 0 : index
    %c0_2 = arith.constant 0 : index
    %1 = vector.load %arg2[%c0_1, %c0_2] : memref<8x256xf32, #tpu.memory_space<vmem>>, vector<8x256xf32>
    tpu.vector_store %arg2[%c0_1, %c0_2], %0 {strides = array<i32>} : memref<8x256xf32, #tpu.memory_space<vmem>>, vector<8x256xf32>,
    return
  }
  func.func @transform_0(%arg0: i32) -> (i32, i32) {
    %c0_i32 = arith.constant 0 : i32
    %c0_i32_0 = arith.constant 0 : i32
    return %arg0, %c0_i32 : i32, i32
  }
  func.func @transform_1(%arg0: i32) -> (i32, i32) {
    %c0_i32 = arith.constant 0 : i32
    %c0_i32_0 = arith.constant 0 : i32
    return %arg0, %c0_i32 : i32, i32
  }
}

</mosaic_0001>

<llo_original>
// kernel: identity_copy.1
$region0: #{identity_copy.1}
  #allocation0 [shape = 'u32[]', space=smem, size = 0x4, offset = 0x4, fixed_abs, tag = 'smem constant byte address 0x4 - core index']
  #allocation1 [shape = 'u32[144,128]{1,0:T(1,128)}', space=vmem, size = 0x12000, scoped, tag = 'internal scratch']
  %s0 = inlined_call_operand.vmem [shape: f32[8,256], index: 0, kind: input, shape index: {}, may-alias: {0,1}]
  %s1 = inlined_call_operand.vmem [shape: f32[8,256], index: 1, kind: output, shape index: {}, may-alias: {0,1}]
  %s2 = sld [smem:[#allocation0]]
  $region14: #{identity_copy.1} parent=0
    _
  %s4 = ssub.s32 1, %s2
  %s5 = scalar_select 0, %s4, %s2
  // Predicated region
  $region2: #{identity_copy.1} parent=0 // pred_check
    _
  $region3: #{identity_copy.1} parent=0 // pred_check_branch
    %7 = sbr.rel (0) target = $region5
  $region4: #{identity_copy.1} parent=0 // pred_region
    _
  $region5: #{identity_copy.1} parent=0 // pred_fallthru
    _
  %v8 = vld [vmem:[%s0] sm:$0xff]
  %v9 = vld [vmem:[%s0 + $0x8] sm:$0xff]
  %10 = vst [vmem:[%s1] sm:$0xff] %v8
  %11 = vst [vmem:[%s1 + $0x8] sm:$0xff] %v9
  // Predicated region
  $region6: #{identity_copy.1} parent=0 // pred_check
    _
  $region7: #{identity_copy.1} parent=0 // pred_check_branch
    %13 = sbr.rel (0) target = $region9
  $region8: #{identity_copy.1} parent=0 // pred_region
    _
  $region9: #{identity_copy.1} parent=0 // pred_fallthru
    _
  // Predicated region
  $region10: #{identity_copy.1} parent=0 // pred_check
    _
  $region11: #{identity_copy.1} parent=0 // pred_check_branch
    %15 = sbr.rel (0) target = $region13
  $region12: #{identity_copy.1} parent=0 // pred_region
    _
  $region13: #{identity_copy.1} parent=0 // pred_fallthru
    _

</llo_original>
